<compile_context>
chip_gen: v5e
topology: v5e:2x2
jax: 0.10.0
libtpu: 0.0.40
codegen_flags: <defaults>
</compile_context>

<pallas_src>
import functools

import jax
import jax.numpy as jnp
from jax.experimental import pallas as pl
from jax.experimental.pallas import tpu as pltpu

LANES = 128
MAX_ROW_TILE = 2048  # 2048 x 128 x f32 = 1 MiB per input tile


def _sse_kernel(a_ref, b_ref, out_ref, acc_ref, *, rows, row_tile, need_mask):
    """Accumulate sum((a-b)^2) across the row-tile grid; write scalar at end."""
    i = pl.program_id(0)

    @pl.when(i == 0)
    def _():
        acc_ref[...] = jnp.zeros_like(acc_ref)

    d = a_ref[...].astype(jnp.float32) - b_ref[...].astype(jnp.float32)

    if need_mask:
        # Last grid block may run past the valid row count; zero those rows.
        row_ids = i * row_tile + jax.lax.broadcasted_iota(
            jnp.int32, (row_tile, LANES), 0)
        d = jnp.where(row_ids < rows, d, 0.0)

    # Pure VPU elementwise accumulate; defer the cross-lane reduce to epilogue.
    acc_ref[...] += d * d

    @pl.when(i == pl.num_programs(0) - 1)
    def _():
        out_ref[...] = jnp.sum(acc_ref[...], keepdims=True)


def _sse_pallas(x, y):
    """sum((x - y)^2) over all elements, computed with a Pallas TPU kernel."""
    assert x.shape == y.shape, (x.shape, y.shape)
    n = x.size
    if n == 0:
        return jnp.float32(0.0)

    xf = x.reshape(-1)
    yf = y.reshape(-1)

    # Pad the flat vectors to a multiple of 128 lanes only if required
    # (static check; zero padding contributes (0-0)^2 = 0 to the sum).
    rem = n % LANES
    if rem:
        pad = LANES - rem
        xf = jnp.pad(xf, (0, pad))
        yf = jnp.pad(yf, (0, pad))

    rows = xf.shape[0] // LANES
    x2d = xf.reshape(rows, LANES)
    y2d = yf.reshape(rows, LANES)

    if rows <= MAX_ROW_TILE:
        row_tile = rows          # single block == full array dims
        grid_rows = 1
    else:
        row_tile = MAX_ROW_TILE  # multiple of 8 sublanes
        grid_rows = pl.cdiv(rows, row_tile)
    need_mask = (rows % row_tile) != 0

    kernel = functools.partial(
        _sse_kernel, rows=rows, row_tile=row_tile, need_mask=need_mask)

    bytes_in = x2d.size * x2d.dtype.itemsize + y2d.size * y2d.dtype.itemsize

    out = pl.pallas_call(
        kernel,
        out_shape=jax.ShapeDtypeStruct((1, 1), jnp.float32),
        grid_spec=pltpu.PrefetchScalarGridSpec(
            num_scalar_prefetch=0,
            grid=(grid_rows,),
            in_specs=[
                pl.BlockSpec((row_tile, LANES), lambda i: (i, 0)),
                pl.BlockSpec((row_tile, LANES), lambda i: (i, 0)),
            ],
            out_specs=pl.BlockSpec((1, 1), lambda i: (0, 0)),
            scratch_shapes=[pltpu.VMEM((row_tile, LANES), jnp.float32)],
        ),
        compiler_params=pltpu.CompilerParams(
            dimension_semantics=("arbitrary",),
        ),
        cost_estimate=pl.CostEstimate(
            flops=3 * n, transcendentals=0, bytes_accessed=bytes_in + 4),
    )(x2d, y2d)

    return out[0, 0]


def derivative_loss(prediction, h_data, Hx, Hx_choose):
    """Pallas implementation of DerivativeLossFunc.forward."""
    return _sse_pallas(prediction, h_data) + _sse_pallas(Hx, Hx_choose)


if __name__ == "__main__":
    key = jax.random.PRNGKey(0)
    k1, k2, k3, k4 = jax.random.split(key, 4)

    # Small NCHW-ish shapes; h_data / Hx_choose are the fixed "targets"
    # that the PyTorch module stores in __init__.
    pred_shape = (2, 4, 16, 16)
    hx_shape = (2, 4, 16, 16)

    prediction = jax.random.normal(k1, pred_shape, dtype=jnp.float32)
    h_data = jax.random.normal(k2, pred_shape, dtype=jnp.float32)
    Hx = jax.random.normal(k3, hx_shape, dtype=jnp.float32)
    Hx_choose = jax.random.normal(k4, hx_shape, dtype=jnp.float32)

    loss = derivative_loss(prediction, h_data, Hx, Hx_choose)
    loss = jax.block_until_ready(loss)

    # Reference check in plain JAX (mirrors the PyTorch forward exactly).
    ref = jnp.sum((prediction - h_data) ** 2) + jnp.sum((Hx - Hx_choose) ** 2)
    assert jnp.allclose(loss, ref, rtol=1e-5, atol=1e-5), (loss, ref)

    # Also exercise a non-128-divisible / multi-block path for safety.
    big_shape = (3, 5, 37, 41)  # 22755 elements -> padded + masked path
    a = jax.random.normal(k1, big_shape, dtype=jnp.float32)
    b = jax.random.normal(k2, big_shape, dtype=jnp.float32)
    loss2 = jax.block_until_ready(_sse_pallas(a, b))
    ref2 = jnp.sum((a - b) ** 2)
    assert jnp.allclose(loss2, ref2, rtol=1e-5, atol=1e-5), (loss2, ref2)

    print("KERNEL_OK")
</pallas_src>

<mosaic_0001>
module attributes {stable_mosaic.version = 11 : i64} {
  func.func @_sse_kernel(%arg0: i32, %arg1: memref<16x128xf32, #tpu.memory_space<vmem>>, %arg2: memref<16x128xf32, #tpu.memory_space<vmem>>, %arg3: memref<1x1xf32, #tpu.memory_space<vmem>>, %arg4: memref<16x128xf32, #tpu.memory_space<vmem>>) attributes {dimension_semantics = [#tpu.dimension_semantics<arbitrary>], iteration_bounds = array<i64: 1>, scalar_prefetch = 0 : i64, scratch_operands = 1 : i64, tpu.core_type = #tpu.core_type<tc>, window_params = [{transform_indices = @transform_0, window_bounds = array<i64: 16, 128>}, {transform_indices = @transform_1, window_bounds = array<i64: 16, 128>}, {pipeline_mode = #tpu.pipeline_mode<synchronous>, transform_indices = @transform_2, window_bounds = array<i64: 1, 1>}]} {
    %c0_i32 = arith.constant 0 : i32
    %0 = arith.cmpi eq, %arg0, %c0_i32 : i32
    %1 = arith.extui %0 : i1 to i32
    %c0_i32_0 = arith.constant 0 : i32
    %2 = arith.cmpi ne, %1, %c0_i32_0 : i32
    scf.if %2 {
      %cst = arith.constant 0.000000e+00 : f32
      %13 = vector.broadcast %cst : f32 to vector<16x128xf32>
      %c0_10 = arith.constant 0 : index
      %c0_11 = arith.constant 0 : index
      %14 = vector.load %arg4[%c0_10, %c0_11] : memref<16x128xf32, #tpu.memory_space<vmem>>, vector<16x128xf32>
      tpu.vector_store %arg4[%c0_10, %c0_11], %13 {strides = array<i32>} : memref<16x128xf32, #tpu.memory_space<vmem>>, vector<16x128xf32>,
    } else {
    }
    %c0 = arith.constant 0 : index
    %c0_1 = arith.constant 0 : index
    %3 = vector.load %arg1[%c0, %c0_1] : memref<16x128xf32, #tpu.memory_space<vmem>>, vector<16x128xf32>
    %c0_2 = arith.constant 0 : index
    %c0_3 = arith.constant 0 : index
    %4 = vector.load %arg2[%c0_2, %c0_3] : memref<16x128xf32, #tpu.memory_space<vmem>>, vector<16x128xf32>
    %5 = arith.subf %3, %4 : vector<16x128xf32>
    %c0_4 = arith.constant 0 : index
    %c0_5 = arith.constant 0 : index
    %6 = vector.load %arg4[%c0_4, %c0_5] : memref<16x128xf32, #tpu.memory_space<vmem>>, vector<16x128xf32>
    %7 = arith.mulf %5, %5 : vector<16x128xf32>
    %8 = arith.addf %6, %7 : vector<16x128xf32>
    %c0_6 = arith.constant 0 : index
    %c0_7 = arith.constant 0 : index
    %9 = vector.load %arg4[%c0_6, %c0_7] : memref<16x128xf32, #tpu.memory_space<vmem>>, vector<16x128xf32>
    tpu.vector_store %arg4[%c0_6, %c0_7], %8 {strides = array<i32>} : memref<16x128xf32, #tpu.memory_space<vmem>>, vector<16x128xf32>,
    %c0_i32_8 = arith.constant 0 : i32
    %10 = arith.cmpi eq, %arg0, %c0_i32_8 : i32
    %11 = arith.extui %10 : i1 to i32
    %c0_i32_9 = arith.constant 0 : i32
    %12 = arith.cmpi ne, %11, %c0_i32_9 : i32
    scf.if %12 {
      %c0_10 = arith.constant 0 : index
      %c0_11 = arith.constant 0 : index
      %13 = vector.load %arg4[%c0_10, %c0_11] : memref<16x128xf32, #tpu.memory_space<vmem>>, vector<16x128xf32>
      %14 = vector.shape_cast %13 : vector<16x128xf32> to vector<1x16x128xf32>
      %cst = arith.constant dense<0.000000e+00> : vector<1xf32>
      %15 = vector.multi_reduction <add>, %14, %cst [1, 2] : vector<1x16x128xf32> to vector<1xf32>
      %16 = vector.shape_cast %15 : vector<1xf32> to vector<1x1x1xf32>
      %17 = vector.extract %16[0, 0, 0] : f32 from vector<1x1x1xf32>
      %18 = vector.broadcast %17 : f32 to vector<1x1xf32>
      %c0_12 = arith.constant 0 : index
      %c0_13 = arith.constant 0 : index
      %19 = vector.load %arg3[%c0_12, %c0_13] : memref<1x1xf32, #tpu.memory_space<vmem>>, vector<1x1xf32>
      tpu.vector_store %arg3[%c0_12, %c0_13], %18 {strides = array<i32>} : memref<1x1xf32, #tpu.memory_space<vmem>>, vector<1x1xf32>,
    } else {
    }
    return
  }
  func.func @transform_0(%arg0: i32) -> (i32, i32) {
    %c0_i32 = arith.constant 0 : i32
    %c0_i32_0 = arith.constant 0 : i32
    return %arg0, %c0_i32 : i32, i32
  }
  func.func @transform_1(%arg0: i32) -> (i32, i32) {
    %c0_i32 = arith.constant 0 : i32
    %c0_i32_0 = arith.constant 0 : i32
    return %arg0, %c0_i32 : i32, i32
  }
  func.func @transform_2(%arg0: i32) -> (i32, i32) {
    %c0_i32 = arith.constant 0 : i32
    %c0_i32_0 = arith.constant 0 : i32
    %c0_i32_1 = arith.constant 0 : i32
    return %c0_i32, %c0_i32_0 : i32, i32
  }
}

</mosaic_0001>

<llo_original>
// kernel: tpu_custom_call.1
$region0: #{tpu_custom_call.1}
  #allocation0 [shape = 'u32[]', space=smem, size = 0x4, offset = 0x4, fixed_abs, tag = 'smem constant byte address 0x4 - core index']
  #allocation1 [shape = 'u32[72,128]{1,0:T(1,128)}', space=vmem, size = 0x9000, scoped, tag = 'internal scratch']
  #allocation2 [shape = 'f32[16,128]{1,0:T(8,128)}', space=vmem, size = 0x2000, scoped, tag = 'scratch operand']
  %s0 = inlined_call_operand.hbm [shape: f32[16,128], index: 0, kind: input, shape index: {}]
  %s1 = inlined_call_operand.hbm [shape: f32[16,128], index: 1, kind: input, shape index: {}]
  %s2 = inlined_call_operand.hbm [shape: f32[1,1], index: 2, kind: output, shape index: {}]
  %s3 = sld [smem:[#allocation0]]
  $region34: #{tpu_custom_call.1} parent=0
    _
  %s5 = ssub.s32 1, %s3
  %s6 = scalar_select 0, %s5, %s3
  $region1: #{tpu_custom_call.1} parent=0
    #allocation3 [shape = 'u8[8192]{0}', space=vmem, size = 0x2000, scoped, tag = 'input window, operand 0, single buffered']
    #allocation4 [shape = 's32[1]{0}', space=sflag, size = 0x4, scoped, tag = 'scoped memory for tpu_custom_call.1']
    #allocation5 [shape = 's32[1]{0}', space=sflag, size = 0x4, scoped, tag = 'scoped memory for tpu_custom_call.1']
    #allocation6 [shape = 'u8[8192]{0}', space=vmem, size = 0x2000, scoped, tag = 'input window, operand 1, single buffered']
    #allocation7 [shape = 's32[1]{0}', space=sflag, size = 0x4, scoped, tag = 'scoped memory for tpu_custom_call.1']
    #allocation8 [shape = 'u8[512]{0}', space=vmem, size = 0x400, scoped, tag = 'output window, operand 0, single buffered']
    %7 = vsyncpa [#allocation4], 0
    %8 = vsyncpa [#allocation7], 0
    %9 = vsyncpa [#allocation5], 0
    // Predicated region
    $region2: #{tpu_custom_call.1} parent=1 // pred_check
      _
    $region3: #{tpu_custom_call.1} parent=1 // pred_check_branch
      %11 = sbr.rel (0) target = $region5
    $region4: #{tpu_custom_call.1} parent=1 // pred_region
      %13 = vsyncadd [#allocation4], 0
      %s14 = sshll.u32 %s0, 4
      %s15 = int_to_ptr.hbm [resolvable:$true] %s14
      %s16 = sshll.u32 [#allocation3], 4
      %s17 = int_to_ptr.vmem [resolvable:$true] %s16
      %22 = dma.hbm_to_vmem [thread:$0]  %s15, 256, %s17, [#allocation4], 128, 128, 8
    $region5: #{tpu_custom_call.1} parent=1 // pred_fallthru
      _
    // Predicated region
    $region6: #{tpu_custom_call.1} parent=1 // pred_check
      _
    $region7: #{tpu_custom_call.1} parent=1 // pred_check_branch
      %24 = sbr.rel (0) target = $region9
    $region8: #{tpu_custom_call.1} parent=1 // pred_region
      %26 = vsyncadd [#allocation7], 0
      %s27 = sshll.u32 %s1, 4
      %s28 = int_to_ptr.hbm [resolvable:$true] %s27
      %s29 = sshll.u32 [#allocation6], 4
      %s30 = int_to_ptr.vmem [resolvable:$true] %s29
      %35 = dma.hbm_to_vmem [thread:$0]  %s28, 256, %s30, [#allocation7], 128, 128, 8
    $region9: #{tpu_custom_call.1} parent=1 // pred_fallthru
      _
    // Predicated region
    $region10: #{tpu_custom_call.1} parent=1 // pred_check
      _
    $region11: #{tpu_custom_call.1} parent=1 // pred_check_branch
      %37 = sbr.rel (0) target = $region13
    $region12: #{tpu_custom_call.1} parent=1 // pred_region
      %39 = dma.done [#allocation4], 256
    $region13: #{tpu_custom_call.1} parent=1 // pred_fallthru
      _
    // Predicated region
    $region14: #{tpu_custom_call.1} parent=1 // pred_check
      _
    $region15: #{tpu_custom_call.1} parent=1 // pred_check_branch
      %41 = sbr.rel (0) target = $region17
    $region16: #{tpu_custom_call.1} parent=1 // pred_region
      %43 = dma.done [#allocation7], 256
    $region17: #{tpu_custom_call.1} parent=1 // pred_fallthru
      _
    %p44 = scmp.eq.s32.totalorder 0, 0
    // Predicated region
    $region18: #{tpu_custom_call.1} parent=1 // pred_check
      %p45 = pneg %p44
    $region19: #{tpu_custom_call.1} parent=1 // pred_check_branch
      %47 = sbr.rel (%p45) target = $region21
    $region20: #{tpu_custom_call.1} parent=1 // pred_region
      %48 = vst [vmem:[#allocation2] sm:$0xff] 0.0
      %49 = vst [vmem:[#allocation2 + $0x8] sm:$0xff] 0.0
    $region21: #{tpu_custom_call.1} parent=1 // pred_fallthru
      _
    %v50 = vld [vmem:[#allocation3] sm:$0xff]
    %v51 = vld [vmem:[#allocation3 + $0x8] sm:$0xff]
    %v52 = vld [vmem:[#allocation6] sm:$0xff]
    %v53 = vld [vmem:[#allocation6 + $0x8] sm:$0xff]
    %v54 = vsub.f32 %v50, %v52
    %v55 = vsub.f32 %v51, %v53
    %v56 = vld [vmem:[#allocation2] sm:$0xff]
    %v57 = vld [vmem:[#allocation2 + $0x8] sm:$0xff]
    %v58 = vmul.f32 %v54, %v54
    %v59 = vmul.f32 %v55, %v55
    %v60 = vadd.f32 %v56, %v58
    %v61 = vadd.f32 %v57, %v59
    %62 = vst [vmem:[#allocation2] sm:$0xff] %v60
    %63 = vst [vmem:[#allocation2 + $0x8] sm:$0xff] %v61
    // Predicated region
    $region22: #{tpu_custom_call.1} parent=1 // pred_check
      %p64 = pneg %p44
    $region23: #{tpu_custom_call.1} parent=1 // pred_check_branch
      %66 = sbr.rel (%p64) target = $region25
    $region24: #{tpu_custom_call.1} parent=1 // pred_region
      %v67 = vld [vmem:[#allocation2] sm:$0xff]
      %v68 = vld [vmem:[#allocation2 + $0x8] sm:$0xff]
      %v69 = vadd.f32 %v67, %v68
      %70 = vadd.xlane.f32.xlu0 %v69
      %v71 = vpop.xlane.xlu0 %70
      %v72 = vrot.slane %v71, 4
      %v73 = vadd.f32 %v71, %v72
      %v74 = vrot.slane %v73, 2
      %v75 = vadd.f32 %v73, %v74
      %v76 = vrot.slane %v75, 1
      %v77 = vadd.f32 %v75, %v76
      %s78 = vtos %v77
      %v79 = vstv %s78
      %vm80 = vcmask 0
      %81 = vst.msk [vmem:[#allocation8] sm:$0x1] %vm80, %v79
    $region25: #{tpu_custom_call.1} parent=1 // pred_fallthru
      _
    // Predicated region
    $region26: #{tpu_custom_call.1} parent=1 // pred_check
      _
    $region27: #{tpu_custom_call.1} parent=1 // pred_check_branch
      %83 = sbr.rel (0) target = $region29
    $region28: #{tpu_custom_call.1} parent=1 // pred_region
      %85 = vsyncadd [#allocation5], 0
      %s87 = sshll.u32 [#allocation8], 4
      %s88 = int_to_ptr.vmem [resolvable:$true] %s87
      %s89 = sshll.u32 %s2, 4
      %s90 = int_to_ptr.hbm [resolvable:$true] %s89
      %92 = dma.vmem_to_hbm [thread:$0]  %s88, 16, %s90, [#allocation5]
    $region29: #{tpu_custom_call.1} parent=1 // pred_fallthru
      _
    // Predicated region
    $region30: #{tpu_custom_call.1} parent=1 // pred_check
      _
    $region31: #{tpu_custom_call.1} parent=1 // pred_check_branch
      %94 = sbr.rel (0) target = $region33
    $region32: #{tpu_custom_call.1} parent=1 // pred_region
      %96 = dma.done [#allocation5], 16
    $region33: #{tpu_custom_call.1} parent=1 // pred_fallthru
      _
    %97 = vsyncpa [#allocation4], 1
    %98 = vsyncpa [#allocation7], 1
    %99 = vsyncpa [#allocation5], 1

</llo_original>
